<compile_context>
chip_gen: v7x
topology: tpu7x:2x2x1
jax: 0.10.0
libtpu: 0.0.40
codegen_flags: <defaults>
</compile_context>

<pallas_src>
import functools
import math

import jax
import jax.numpy as jnp
from jax import lax
from jax.experimental import pallas as pl
from jax.experimental.pallas import tpu as pltpu

NEG_INF = -1e30
LEAKY_SLOPE = 0.2          # PyG GATConv default negative_slope
NORM_EPS = 0.0005          # F.normalize(..., eps=0.0005)


def _round_up(v, m):
    return ((v + m - 1) // m) * m


def _vmem_limit_bytes():
    """Per-generation VMEM limit: ~3/4 of physical per-TensorCore VMEM
    (v5e/v6e: 128 MiB -> 96 MiB, v7x: 64 MiB -> 48 MiB)."""
    cap = None
    try:
        info = pltpu.get_tpu_info()
        for name in ("vmem_capacity_bytes", "vmem_bytes", "vmem_size_bytes"):
            cap = getattr(info, name, None)
            if cap:
                break
    except Exception:
        cap = None
    if not cap:
        cap = 64 * 1024 * 1024          # conservative default = v7x per-core VMEM
    return int(min(cap * 3 // 4, 112 * 1024 * 1024))


def _attn_vmem_need(t, c, heads, ho):
    """Honest VMEM model: tile-padded blocks x double buffering + scratch +
    live [H, T, C] f32 softmax temporaries (e, p, bf16 p + headroom)."""
    ho_l = _round_up(ho, 128)
    hs = _round_up(heads, 8)
    t_l = _round_up(t, 128)
    blocks = 2 * (t * c * 2            # adj tile (bf16)
                  + c * ho_l * 2       # h tile (bf16, lanes padded to 128)
                  + hs * c * 4         # alpha_src tile
                  + hs * t_l * 4       # alpha_dst tile
                  + t * ho_l * 4)      # output tile
    scratch = t * ho_l * 4 + 2 * hs * t_l * 4
    temps = 4 * heads * t * c * 4
    return blocks + scratch + temps


def _attention_tiles(n, heads, ho, vmem_budget, row_tile=None, src_chunk=None):
    """Pick (row_tile, src_chunk, n_pad).  row_tile sits on the lane axis of the
    [H, row_tile] alpha_dst block, so it must be a multiple of 128 (or cover the
    whole padded graph); same for src_chunk (lane axis of adj / alpha_src)."""
    n8 = _round_up(n, 8)
    if row_tile is not None or src_chunk is not None:
        t = int(row_tile if row_tile is not None else src_chunk)
        c = int(src_chunk if src_chunk is not None else row_tile)
        assert t % 8 == 0 and c % 8 == 0
        n_pad = _round_up(n8, t * c // math.gcd(t, c))
        assert t % 128 == 0 or t == n_pad, "row_tile must be %128==0 or == n_pad"
        assert c % 128 == 0 or c == n_pad, "src_chunk must be %128==0 or == n_pad"
        return t, c, n_pad
    if n8 <= 256:                       # tiny graph: single block, trivially fits
        return n8, n8, n8
    n_pad = _round_up(n, 128)
    cands = sorted({d for d in (1024, 512, 384, 256, 128, n_pad)
                    if d <= n_pad and n_pad % d == 0
                    and (d % 128 == 0 or d == n_pad)}, reverse=True)
    best, best_key = (128, 128), None
    for t in cands:
        for c in cands:
            if _attn_vmem_need(t, c, heads, ho) <= vmem_budget:
                key = (t * c, c)        # biggest tiles; prefer wide (lane-dense) chunks
                if best_key is None or key > best_key:
                    best_key, best = key, (t, c)
    return best[0], best[1], n_pad


def _proj_tile(n_pad, fin, k_out, vmem_budget):
    """Projection row tile, independent of (and much larger than) the attention tile."""
    fin_l = _round_up(fin, 128)
    k_l = _round_up(k_out, 128)

    def need(t):
        return 2 * t * (fin_l + k_l) * 4 + 2 * fin * k_l * 4

    if need(n_pad) <= vmem_budget // 4:
        return n_pad
    for t in (4096, 2048, 1024, 512, 256, 128):
        if t < n_pad and n_pad % t == 0 and need(t) <= vmem_budget // 4:
            return t
    return n_pad


# ---------------------------------------------------------------------------
# Kernel 1: fused projection  [x | -> h, alpha_src, alpha_dst]  (one MXU matmul)
# ---------------------------------------------------------------------------
def _proj_kernel(x_ref, w_ref, o_ref):
    o_ref[...] = jnp.dot(x_ref[...], w_ref[...], preferred_element_type=jnp.float32)


def _gat_project(x, w_cat, proj_tile, vmem_limit):
    n_pad, fin = x.shape
    k_out = w_cat.shape[1]
    grid = (n_pad // proj_tile,)
    return pl.pallas_call(
        _proj_kernel,
        grid=grid,
        in_specs=[
            pl.BlockSpec((proj_tile, fin), lambda i: (i, 0)),
            pl.BlockSpec((fin, k_out), lambda i: (0, 0)),
        ],
        out_specs=pl.BlockSpec((proj_tile, k_out), lambda i: (i, 0)),
        out_shape=jax.ShapeDtypeStruct((n_pad, k_out), jnp.float32),
        compiler_params=pltpu.CompilerParams(
            dimension_semantics=("parallel",),
            vmem_limit_bytes=vmem_limit),
    )(x, w_cat)


# ---------------------------------------------------------------------------
# Kernel 2: online-softmax attention + aggregation over source-node chunks
# ---------------------------------------------------------------------------
def _attn_kernel(adj_ref, h_ref, asrc_ref, adst_ref, bias_ref, out_ref,
                 m_sc, l_sc, acc_sc, *, heads, out_dim, activation):
    j = pl.program_id(1)

    @pl.when(j == 0)
    def _():
        m_sc[...] = jnp.full_like(m_sc, NEG_INF)
        l_sc[...] = jnp.zeros_like(l_sc)
        acc_sc[...] = jnp.zeros_like(acc_sc)

    ho = heads * out_dim
    mask = adj_ref[...] > 0                      # [T, C] straight off the bf16 tile
    asrc = asrc_ref[...]                         # [H, C]
    adst = adst_ref[...]                         # [H, T]

    # logits e[h, t, c] = LeakyReLU(adst[h, t] + asrc[h, c]) for edge c -> t
    e = adst[:, :, None] + asrc[:, None, :]      # [H, T, C]
    e = jnp.where(e > 0, e, LEAKY_SLOPE * e)
    e = jnp.where(mask[None, :, :], e, NEG_INF)  # mask once, before the running max

    # online softmax update (running per-head, per-target max / sum)
    m_prev = m_sc[...]
    m_new = jnp.maximum(m_prev, jnp.max(e, axis=-1))      # [H, T]
    alpha = jnp.exp(m_prev - m_new)                        # [H, T]
    p = jnp.exp(e - m_new[:, :, None])                     # [H, T, C]; non-edges -> 0
    l_sc[...] = alpha * l_sc[...] + jnp.sum(p, axis=-1)
    m_sc[...] = m_new

    # head-block selector sel[h, k] = 1 iff output column k belongs to head h
    sel = (lax.broadcasted_iota(jnp.int32, (heads, ho), 1) // out_dim ==
           lax.broadcasted_iota(jnp.int32, (heads, ho), 0)).astype(jnp.float32)
    # accumulator rescale, expanded [H, T] -> [T, H*O] with a tiny matmul
    scale = lax.dot_general(alpha, sel, (((0,), (0,)), ((), ())),
                            preferred_element_type=jnp.float32)

    # per-head aggregation, kept lane-dense: mask h's columns to the head's block
    # and run full-width bf16 MXU matmuls with f32 accumulation.
    h16 = h_ref[...]                             # [C, H*O] bf16
    p16 = p.astype(jnp.bfloat16)
    col_head = lax.broadcasted_iota(jnp.int32, (1, ho), 1) // out_dim
    acc = acc_sc[...] * scale
    for hd in range(heads):                      # static unroll; heads is small
        h_hd = h16 * (col_head == hd).astype(jnp.bfloat16)
        acc = acc + jnp.dot(p16[hd], h_hd, preferred_element_type=jnp.float32)
    acc_sc[...] = acc

    @pl.when(j == pl.num_programs(1) - 1)
    def _():
        inv = 1.0 / l_sc[...]                    # exact divide; off the hot path
        inv_e = lax.dot_general(inv, sel, (((0,), (0,)), ((), ())),
                                preferred_element_type=jnp.float32)
        z = acc_sc[...] * inv_e + bias_ref[...]
        if activation == "elu":
            z = jnp.where(z > 0, z, jnp.exp(jnp.minimum(z, 0.0)) - 1.0)
        else:  # "l2norm": F.normalize(p=2, dim=1, eps=NORM_EPS)
            ss = jnp.sum(z * z, axis=-1, keepdims=True)
            z = z * lax.rsqrt(jnp.maximum(ss, NORM_EPS * NORM_EPS))
        out_ref[...] = z


def _gat_attention(adj, h16, asrc, adst, bias, heads, out_dim,
                   row_tile, src_chunk, activation, vmem_limit):
    n_pad = adj.shape[0]
    ho = heads * out_dim
    grid = (n_pad // row_tile, n_pad // src_chunk)
    kernel = functools.partial(_attn_kernel, heads=heads, out_dim=out_dim,
                               activation=activation)
    cost = pl.CostEstimate(
        flops=int(2 * heads * ho * n_pad * n_pad + 8 * heads * n_pad * n_pad),
        transcendentals=int(heads * n_pad * n_pad),
        bytes_accessed=int(adj.size * 2
                           + grid[0] * (h16.size * 2 + (asrc.size + adst.size) * 4)
                           + n_pad * ho * 4))
    return pl.pallas_call(
        kernel,
        grid=grid,
        in_specs=[
            pl.BlockSpec((row_tile, src_chunk), lambda i, j: (i, j)),   # adj (bf16)
            pl.BlockSpec((src_chunk, ho), lambda i, j: (j, 0)),         # h (bf16)
            pl.BlockSpec((heads, src_chunk), lambda i, j: (0, j)),      # alpha_src
            pl.BlockSpec((heads, row_tile), lambda i, j: (0, i)),       # alpha_dst
            pl.BlockSpec((1, ho), lambda i, j: (0, 0)),                 # bias (tiny)
        ],
        out_specs=pl.BlockSpec((row_tile, ho), lambda i, j: (i, 0)),
        out_shape=jax.ShapeDtypeStruct((n_pad, ho), jnp.float32),
        scratch_shapes=[
            pltpu.VMEM((heads, row_tile), jnp.float32),   # running max
            pltpu.VMEM((heads, row_tile), jnp.float32),   # running sum
            pltpu.VMEM((row_tile, ho), jnp.float32),      # accumulator
        ],
        compiler_params=pltpu.CompilerParams(
            dimension_semantics=("parallel", "arbitrary"),
            vmem_limit_bytes=vmem_limit),
        cost_estimate=cost,
    )(adj, h16, asrc, adst, bias)


# ---------------------------------------------------------------------------
# Wrapper
# ---------------------------------------------------------------------------
def _att_block_matrix(a):
    """[H, O] -> [H*O, H] so that (h @ M)[n, k] = a[k] . h[n, k*O:(k+1)*O]."""
    heads, out_dim = a.shape
    eye = jnp.eye(heads, dtype=a.dtype)
    return jnp.einsum('ho,hk->hok', a, eye).reshape(heads * out_dim, heads)


def encoder_gat_forward(x, edge_index, params, *, row_tile=None, src_chunk=None):
    """x: [N, Fin] float32, edge_index: [2, E] int32 (row0=src, row1=dst)."""
    n, fin = x.shape
    heads1, out1 = params['a_src1'].shape
    heads2, out2 = params['a_src2'].shape

    vmem_limit = _vmem_limit_bytes()
    budget = vmem_limit * 4 // 5            # headroom for Mosaic internal scratch
    heads_sz = max(heads1, heads2)
    ho_sz = max(heads1 * out1, heads2 * out2)
    row_t, chunk, n_pad = _attention_tiles(n, heads_sz, ho_sz, budget,
                                           row_tile=row_tile, src_chunk=src_chunk)

    # dense adjacency mask adj[i, j] = 1 iff edge j -> i, plus self loops;
    # built directly in bf16 (0/1 exact) -> half the N^2 HBM traffic.
    src, tgt = edge_index[0], edge_index[1]
    adj = jnp.zeros((n_pad, n_pad), jnp.bfloat16)
    adj = adj.at[tgt, src].set(1.0)
    idx = jnp.arange(n)
    adj = adj.at[idx, idx].set(1.0)

    xp = jnp.zeros((n_pad, fin), jnp.float32).at[:n].set(x.astype(jnp.float32))

    def layer(feat, w, a_src, a_dst, b, heads, out_dim, activation):
        ho = heads * out_dim
        # fused projection weights: [Fin, H*O + 2H] = [W | W@A_src | W@A_dst]
        w_cat = jnp.concatenate(
            [w, w @ _att_block_matrix(a_src), w @ _att_block_matrix(a_dst)], axis=1)
        pt = _proj_tile(n_pad, feat.shape[1], w_cat.shape[1], budget)
        slab = _gat_project(feat, w_cat, pt, vmem_limit)
        h16 = slab[:, :ho].astype(jnp.bfloat16)          # lane-dense [N, H*O] bf16
        asrc = slab[:, ho:ho + heads].T                  # [H, N]
        adst = slab[:, ho + heads:ho + 2 * heads].T      # [H, N]
        return _gat_attention(adj, h16, asrc, adst, b.reshape(1, ho),
                              heads, out_dim, row_t, chunk, activation, vmem_limit)

    # layer 1: GATConv(heads=heads1, concat) -> ELU
    z1 = layer(xp, params['w1'], params['a_src1'], params['a_dst1'], params['b1'],
               heads1, out1, "elu")
    # layer 2: GATConv(heads=heads2, concat) -> F.normalize(eps=0.0005)
    z2 = layer(z1, params['w2'], params['a_src2'], params['a_dst2'], params['b2'],
               heads2, out2, "l2norm")
    return z2[:n]


# ---------------------------------------------------------------------------
# Pure-JAX reference (eval-mode semantics) for a numerical sanity check
# ---------------------------------------------------------------------------
def _reference_forward(x, edge_index, params):
    n = x.shape[0]
    adj = jnp.zeros((n, n), jnp.float32).at[edge_index[1], edge_index[0]].set(1.0)
    adj = adj.at[jnp.arange(n), jnp.arange(n)].set(1.0)

    def gat_layer(feat, w, a_src, a_dst, b):
        heads, o = a_src.shape
        h = feat @ w
        hh = h.reshape(n, heads, o)
        asrc = jnp.einsum('nho,ho->nh', hh, a_src)
        adst = jnp.einsum('nho,ho->nh', hh, a_dst)
        e = adst[:, None, :] + asrc[None, :, :]            # [tgt, src, head]
        e = jnp.where(e > 0, e, LEAKY_SLOPE * e)
        e = jnp.where(adj[:, :, None] > 0, e, NEG_INF)
        p = jax.nn.softmax(e, axis=1)
        out = jnp.einsum('tsh,sho->tho', p, hh).reshape(n, heads * o)
        return out + b

    z1 = jax.nn.elu(gat_layer(x, params['w1'], params['a_src1'],
                              params['a_dst1'], params['b1']))
    z2 = gat_layer(z1, params['w2'], params['a_src2'],
                   params['a_dst2'], params['b2'])
    nrm = jnp.maximum(jnp.linalg.norm(z2, axis=1, keepdims=True), NORM_EPS)
    return z2 / nrm


def init_params(key, in_channels, out_channels=8, heads1=8, heads2=4):
    ks = jax.random.split(key, 8)

    def glorot(k, shape):
        fan_in, fan_out = shape[0], shape[-1]
        scale = jnp.sqrt(2.0 / (fan_in + fan_out))
        return scale * jax.random.normal(k, shape, jnp.float32)

    hid1 = heads1 * out_channels
    return {
        'w1': glorot(ks[0], (in_channels, heads1 * out_channels)),
        'a_src1': glorot(ks[1], (heads1, out_channels)),
        'a_dst1': glorot(ks[2], (heads1, out_channels)),
        'b1': 0.1 * jax.random.normal(ks[6], (heads1 * out_channels,), jnp.float32),
        'w2': glorot(ks[3], (hid1, heads2 * out_channels)),
        'a_src2': glorot(ks[4], (heads2, out_channels)),
        'a_dst2': glorot(ks[5], (heads2, out_channels)),
        'b2': 0.1 * jax.random.normal(ks[7], (heads2 * out_channels,), jnp.float32),
    }


if __name__ == "__main__":
    key = jax.random.PRNGKey(0)
    k_x, k_e, k_p = jax.random.split(key, 3)

    N, IN_CH, E = 300, 16, 1500        # small graph; pads to 384 nodes internally
    x = jax.random.normal(k_x, (N, IN_CH), jnp.float32)
    edge_index = jax.random.randint(k_e, (2, E), 0, N, jnp.int32)
    params = init_params(k_p, IN_CH, out_channels=8, heads1=8, heads2=4)

    # explicit 128x128 tiles -> a (3, 3) online-softmax grid even at this toy
    # size; omit them to let the per-generation VMEM budget pick the tiles.
    out = encoder_gat_forward(x, edge_index, params, row_tile=128, src_chunk=128)
    out = jax.block_until_ready(out)

    assert out.shape == (N, 4 * 8)
    assert bool(jnp.all(jnp.isfinite(out)))

    ref = _reference_forward(x, edge_index, params)
    err = float(jnp.max(jnp.abs(out - ref)))
    assert err < 5e-2, f"max abs err vs reference: {err}"
    print("KERNEL_OK")
</pallas_src>

<mosaic_0001>
module attributes {stable_mosaic.version = 11 : i64} {
  func.func @_proj_kernel(%arg0: i32, %arg1: memref<384x16xf32, #tpu.memory_space<vmem>>, %arg2: memref<16x80xf32, #tpu.memory_space<vmem>>, %arg3: memref<384x80xf32, #tpu.memory_space<vmem>>) attributes {dimension_semantics = [#tpu.dimension_semantics<parallel>], iteration_bounds = array<i64: 1>, scalar_prefetch = 0 : i64, scratch_operands = 0 : i64, tpu.core_type = #tpu.core_type<tc>, window_params = [{transform_indices = @transform_0, window_bounds = array<i64: 384, 16>}, {pipeline_mode = #tpu.pipeline_mode<synchronous>, transform_indices = @transform_1, window_bounds = array<i64: 16, 80>}, {transform_indices = @transform_2, window_bounds = array<i64: 384, 80>}]} {
    %c0 = arith.constant 0 : index
    %c0_0 = arith.constant 0 : index
    %0 = vector.load %arg1[%c0, %c0_0] : memref<384x16xf32, #tpu.memory_space<vmem>>, vector<384x16xf32>
    %c0_1 = arith.constant 0 : index
    %c0_2 = arith.constant 0 : index
    %1 = vector.load %arg2[%c0_1, %c0_2] : memref<16x80xf32, #tpu.memory_space<vmem>>, vector<16x80xf32>
    %cst = arith.constant dense<0.000000e+00> : vector<384x80xf32>
    %2 = tpu.matmul %0, %1, %cst {dimension_numbers = #tpu.dot_dimension_numbers<[1], [0], [0], [1], [0, 0, 1, 1], [], []>} : vector<384x16xf32>, vector<16x80xf32>, vector<384x80xf32> -> vector<384x80xf32>
    %c0_3 = arith.constant 0 : index
    %c0_4 = arith.constant 0 : index
    %3 = vector.load %arg3[%c0_3, %c0_4] : memref<384x80xf32, #tpu.memory_space<vmem>>, vector<384x80xf32>
    tpu.vector_store %arg3[%c0_3, %c0_4], %2 {strides = array<i32>} : memref<384x80xf32, #tpu.memory_space<vmem>>, vector<384x80xf32>,
    return
  }
  func.func @transform_0(%arg0: i32) -> (i32, i32) {
    %c0_i32 = arith.constant 0 : i32
    %c0_i32_0 = arith.constant 0 : i32
    return %arg0, %c0_i32 : i32, i32
  }
  func.func @transform_1(%arg0: i32) -> (i32, i32) {
    %c0_i32 = arith.constant 0 : i32
    %c0_i32_0 = arith.constant 0 : i32
    %c0_i32_1 = arith.constant 0 : i32
    return %c0_i32, %c0_i32_0 : i32, i32
  }
  func.func @transform_2(%arg0: i32) -> (i32, i32) {
    %c0_i32 = arith.constant 0 : i32
    %c0_i32_0 = arith.constant 0 : i32
    return %arg0, %c0_i32 : i32, i32
  }
}

</mosaic_0001>

<llo_original>
// kernel: tpu_custom_call.1
$region0: #{tpu_custom_call.1}
  #allocation0 [shape = 'u32[]', space=smem, size = 0x4, offset = 0x4, fixed_abs, tag = 'smem constant byte address 0x4 - core index']
  #allocation1 [shape = 'u32[144,128]{1,0:T(1,128)}', space=vmem, size = 0x12000, scoped, tag = 'internal scratch']
  %s0 = inlined_call_operand.vmem [shape: f32[384,16], index: 0, kind: input, shape index: {}]
  %s1 = inlined_call_operand.vmem [shape: f32[16,80], index: 1, kind: input, shape index: {}]
  %s2 = inlined_call_operand.vmem [shape: f32[384,80], index: 2, kind: output, shape index: {}]
  %s3 = sld [smem:[#allocation0]]
  $region18: #{tpu_custom_call.1} parent=0
    _
  %s5 = ssub.s32 1, %s3
  %s6 = scalar_select 0, %s5, %s3
  // Predicated region
  $region2: #{tpu_custom_call.1} parent=0 // pred_check
    _
  $region3: #{tpu_custom_call.1} parent=0 // pred_check_branch
    %8 = sbr.rel (0) target = $region5
  $region4: #{tpu_custom_call.1} parent=0 // pred_region
    _
  $region5: #{tpu_custom_call.1} parent=0 // pred_fallthru
    _
  // Predicated region
  $region6: #{tpu_custom_call.1} parent=0 // pred_check
    _
  $region7: #{tpu_custom_call.1} parent=0 // pred_check_branch
    %10 = sbr.rel (0) target = $region9
  $region8: #{tpu_custom_call.1} parent=0 // pred_region
    _
  $region9: #{tpu_custom_call.1} parent=0 // pred_fallthru
    _
  %v11 = vld [vmem:[%s0] sm:$0xff]
  %v12 = vld [vmem:[%s0 + $0x8] sm:$0xff]
  %v13 = vld [vmem:[%s0 + $0x10] sm:$0xff]
  %v14 = vld [vmem:[%s0 + $0x18] sm:$0xff]
  %v15 = vld [vmem:[%s0 + $0x20] sm:$0xff]
  %v16 = vld [vmem:[%s0 + $0x28] sm:$0xff]
  %v17 = vld [vmem:[%s0 + $0x30] sm:$0xff]
  %v18 = vld [vmem:[%s0 + $0x38] sm:$0xff]
  %v19 = vld [vmem:[%s0 + $0x40] sm:$0xff]
  %v20 = vld [vmem:[%s0 + $0x48] sm:$0xff]
  %v21 = vld [vmem:[%s0 + $0x50] sm:$0xff]
  %v22 = vld [vmem:[%s0 + $0x58] sm:$0xff]
  %v23 = vld [vmem:[%s0 + $0x60] sm:$0xff]
  %v24 = vld [vmem:[%s0 + $0x68] sm:$0xff]
  %v25 = vld [vmem:[%s0 + $0x70] sm:$0xff]
  %v26 = vld [vmem:[%s0 + $0x78] sm:$0xff]
  %v27 = vld [vmem:[%s0 + $0x80] sm:$0xff]
  %v28 = vld [vmem:[%s0 + $0x88] sm:$0xff]
  %v29 = vld [vmem:[%s0 + $0x90] sm:$0xff]
  %v30 = vld [vmem:[%s0 + $0x98] sm:$0xff]
  %v31 = vld [vmem:[%s0 + $0xa0] sm:$0xff]
  %v32 = vld [vmem:[%s0 + $0xa8] sm:$0xff]
  %v33 = vld [vmem:[%s0 + $0xb0] sm:$0xff]
  %v34 = vld [vmem:[%s0 + $0xb8] sm:$0xff]
  %v35 = vld [vmem:[%s0 + $0xc0] sm:$0xff]
  %v36 = vld [vmem:[%s0 + $0xc8] sm:$0xff]
  %v37 = vld [vmem:[%s0 + $0xd0] sm:$0xff]
  %v38 = vld [vmem:[%s0 + $0xd8] sm:$0xff]
  %v39 = vld [vmem:[%s0 + $0xe0] sm:$0xff]
  %v40 = vld [vmem:[%s0 + $0xe8] sm:$0xff]
  %v41 = vld [vmem:[%s0 + $0xf0] sm:$0xff]
  %v42 = vld [vmem:[%s0 + $0xf8] sm:$0xff]
  %v43 = vld [vmem:[%s0 + $0x100] sm:$0xff]
  %v44 = vld [vmem:[%s0 + $0x108] sm:$0xff]
  %v45 = vld [vmem:[%s0 + $0x110] sm:$0xff]
  %v46 = vld [vmem:[%s0 + $0x118] sm:$0xff]
  %v47 = vld [vmem:[%s0 + $0x120] sm:$0xff]
  %v48 = vld [vmem:[%s0 + $0x128] sm:$0xff]
  %v49 = vld [vmem:[%s0 + $0x130] sm:$0xff]
  %v50 = vld [vmem:[%s0 + $0x138] sm:$0xff]
  %v51 = vld [vmem:[%s0 + $0x140] sm:$0xff]
  %v52 = vld [vmem:[%s0 + $0x148] sm:$0xff]
  %v53 = vld [vmem:[%s0 + $0x150] sm:$0xff]
  %v54 = vld [vmem:[%s0 + $0x158] sm:$0xff]
  %v55 = vld [vmem:[%s0 + $0x160] sm:$0xff]
  %v56 = vld [vmem:[%s0 + $0x168] sm:$0xff]
  %v57 = vld [vmem:[%s0 + $0x170] sm:$0xff]
  %v58 = vld [vmem:[%s0 + $0x178] sm:$0xff]
  %v59 = vld [vmem:[%s1] sm:$0xff]
  %v60 = vld [vmem:[%s1 + $0x8] sm:$0xff]
  %vm61 = vcmask 130048
  %v63 = vsel %vm61, %v11, 0
  %v66 = vsel %vm61, %v12, 0
  %v69 = vsel %vm61, %v13, 0
  %v72 = vsel %vm61, %v14, 0
  %v75 = vsel %vm61, %v15, 0
  %v78 = vsel %vm61, %v16, 0
  %v81 = vsel %vm61, %v17, 0
  %v84 = vsel %vm61, %v18, 0
  %v87 = vsel %vm61, %v19, 0
  %v90 = vsel %vm61, %v20, 0
  %v93 = vsel %vm61, %v21, 0
  %v96 = vsel %vm61, %v22, 0
  %v99 = vsel %vm61, %v23, 0
  %v102 = vsel %vm61, %v24, 0
  %v105 = vsel %vm61, %v25, 0
  %v108 = vsel %vm61, %v26, 0
  %v111 = vsel %vm61, %v27, 0
  %v114 = vsel %vm61, %v28, 0
  %v117 = vsel %vm61, %v29, 0
  %v120 = vsel %vm61, %v30, 0
  %v123 = vsel %vm61, %v31, 0
  %v126 = vsel %vm61, %v32, 0
  %v129 = vsel %vm61, %v33, 0
  %v132 = vsel %vm61, %v34, 0
  %v135 = vsel %vm61, %v35, 0
  %v138 = vsel %vm61, %v36, 0
  %v141 = vsel %vm61, %v37, 0
  %v144 = vsel %vm61, %v38, 0
  %v147 = vsel %vm61, %v39, 0
  %v150 = vsel %vm61, %v40, 0
  %v153 = vsel %vm61, %v41, 0
  %v156 = vsel %vm61, %v42, 0
  %v159 = vsel %vm61, %v43, 0
  %v162 = vsel %vm61, %v44, 0
  %v165 = vsel %vm61, %v45, 0
  %v168 = vsel %vm61, %v46, 0
  %v171 = vsel %vm61, %v47, 0
  %v174 = vsel %vm61, %v48, 0
  %v177 = vsel %vm61, %v49, 0
  %v180 = vsel %vm61, %v50, 0
  %v183 = vsel %vm61, %v51, 0
  %v186 = vsel %vm61, %v52, 0
  %v189 = vsel %vm61, %v53, 0
  %v192 = vsel %vm61, %v54, 0
  %v195 = vsel %vm61, %v55, 0
  %v198 = vsel %vm61, %v56, 0
  %v201 = vsel %vm61, %v57, 0
  %v204 = vsel %vm61, %v58, 0
  %206 = vmatprep.subr.mxu0 0.0
  %207 = vmatpush1.msra.mxu0 %v59
  %208 = vmatprep.subr.mxu0 0.0
  %209 = vmatpush1.msra.mxu0 %v60
  %210 = vmatprep.subr.mxu0 0.0
  %211 = vmatpush1.msra.mxu0 0.0
  %212 = vmatprep.subr.mxu0 0.0
  %213 = vmatpush1.msra.mxu0 0.0
  %214 = vmatprep.subr.mxu0 0.0
  %215 = vmatpush1.msra.mxu0 0.0
  %216 = vmatprep.subr.mxu0 0.0
  %217 = vmatpush1.msra.mxu0 0.0
  %218 = vmatprep.subr.mxu0 0.0
  %219 = vmatpush1.msra.mxu0 0.0
  %220 = vmatprep.subr.mxu0 0.0
  %221 = vmatpush1.msra.mxu0 0.0
  %222 = vmatprep.subr.mxu0 0.0
  %223 = vmatpush1.msra.mxu0 0.0
  %224 = vmatprep.subr.mxu0 0.0
  %225 = vmatpush1.msra.mxu0 0.0
  %226 = vmatprep.subr.mxu0 0.0
  %227 = vmatpush1.msra.mxu0 0.0
  %228 = vmatprep.subr.mxu0 0.0
  %229 = vmatpush1.msra.mxu0 0.0
  %230 = vmatprep.subr.mxu0 0.0
  %231 = vmatpush1.msra.mxu0 0.0
  %232 = vmatprep.subr.mxu0 0.0
  %233 = vmatpush1.msra.mxu0 0.0
  %234 = vmatprep.subr.mxu0 0.0
  %235 = vmatpush1.msra.mxu0 0.0
  %236 = vmatprep.subr.mxu0 0.0
  %237 = vmatpush1.msra.mxu0 0.0
  %238 = vmatprep.subr.mxu0 0.0
  %239 = vmatpush1.msra.mxu0 0.0
  %240 = vmatprep.subr.mxu0 0.0
  %241 = vmatpush1.msra.mxu0 0.0
  %242 = vmatprep.subr.mxu0 0.0
  %243 = vmatpush1.msra.mxu0 0.0
  %244 = vmatprep.subr.mxu0 0.0
  %245 = vmatpush1.msra.mxu0 0.0
  %246 = vmatprep.subr.mxu0 0.0
  %247 = vmatpush1.msra.mxu0 0.0
  %248 = vmatprep.subr.mxu0 0.0
  %249 = vmatpush1.msra.mxu0 0.0
  %250 = vmatprep.subr.mxu0 0.0
  %251 = vmatpush1.msra.mxu0 0.0
  %252 = vmatprep.subr.mxu0 0.0
  %253 = vmatpush1.msra.mxu0 0.0
  %254 = vmatprep.subr.mxu0 0.0
  %255 = vmatpush1.msra.mxu0 0.0
  %256 = vmatprep.subr.mxu0 0.0
  %257 = vmatpush1.msra.mxu0 0.0
  %258 = vmatprep.subr.mxu0 0.0
  %259 = vmatpush1.msra.mxu0 0.0
  %260 = vmatprep.subr.mxu0 0.0
  %261 = vmatpush1.msra.mxu0 0.0
  %262 = vmatprep.subr.mxu0 0.0
  %263 = vmatpush1.msra.mxu0 0.0
  %264 = vmatprep.subr.mxu0 0.0
  %265 = vmatpush1.msra.mxu0 0.0
  %266 = vmatprep.subr.mxu0 0.0
  %267 = vmatpush1.msra.mxu0 0.0
  %268 = vmatprep.subr.mxu0 0.0
  %269 = vmatpush1.msra.mxu0 0.0
  %270 = vmatprep.mubr.f32.mxu0 0.0
  %271 = vmatmul.mubr.f32.gmra.mrb[0].mxu0 %v63
  %v272 = vpop.f32.mrb[0].mxu0
  %v273 = vadd.f32 0.0, %v272
  %v274 = vpop.f32.mrb[0].mxu0
  %275 = vmatprep.mubr.f32.mxu0 0.0
  %276 = vmatmul.mubr.f32.gmra.mrb[0].mxu0 %v66
  %v277 = vpop.f32.mrb[0].mxu0
  %v278 = vadd.f32 0.0, %v277
  %v279 = vpop.f32.mrb[0].mxu0
  %280 = vmatprep.mubr.f32.mxu0 0.0
  %281 = vmatmul.mubr.f32.gmra.mrb[0].mxu0 %v69
  %v282 = vpop.f32.mrb[0].mxu0
  %v283 = vadd.f32 0.0, %v282
  %v284 = vpop.f32.mrb[0].mxu0
  %285 = vmatprep.mubr.f32.mxu0 0.0
  %286 = vmatmul.mubr.f32.gmra.mrb[0].mxu0 %v72
  %v287 = vpop.f32.mrb[0].mxu0
  %v288 = vadd.f32 0.0, %v287
  %v289 = vpop.f32.mrb[0].mxu0
  %290 = vmatprep.mubr.f32.mxu0 0.0
  %291 = vmatmul.mubr.f32.gmra.mrb[0].mxu0 %v75
  %v292 = vpop.f32.mrb[0].mxu0
  %v293 = vadd.f32 0.0, %v292
  %v294 = vpop.f32.mrb[0].mxu0
  %295 = vmatprep.mubr.f32.mxu0 0.0
  %296 = vmatmul.mubr.f32.gmra.mrb[0].mxu0 %v78
  %v297 = vpop.f32.mrb[0].mxu0
  %v298 = vadd.f32 0.0, %v297
  %v299 = vpop.f32.mrb[0].mxu0
  %300 = vmatprep.mubr.f32.mxu0 0.0
  %301 = vmatmul.mubr.f32.gmra.mrb[0].mxu0 %v81
  %v302 = vpop.f32.mrb[0].mxu0
  %v303 = vadd.f32 0.0, %v302
  %v304 = vpop.f32.mrb[0].mxu0
  %305 = vmatprep.mubr.f32.mxu0 0.0
  %306 = vmatmul.mubr.f32.gmra.mrb[0].mxu0 %v84
  %v307 = vpop.f32.mrb[0].mxu0
  %v308 = vadd.f32 0.0, %v307
  %v309 = vpop.f32.mrb[0].mxu0
  %310 = vmatprep.mubr.f32.mxu0 0.0
  %311 = vmatmul.mubr.f32.gmra.mrb[0].mxu0 %v87
  %v312 = vpop.f32.mrb[0].mxu0
  %v313 = vadd.f32 0.0, %v312
  %v314 = vpop.f32.mrb[0].mxu0
  %315 = vmatprep.mubr.f32.mxu0 0.0
  %316 = vmatmul.mubr.f32.gmra.mrb[0].mxu0 %v90
  %v317 = vpop.f32.mrb[0].mxu0
  %v318 = vadd.f32 0.0, %v317
  %v319 = vpop.f32.mrb[0].mxu0
  %320 = vmatprep.mubr.f32.mxu0 0.0
  %321 = vmatmul.mubr.f32.gmra.mrb[0].mxu0 %v93
  %v322 = vpop.f32.mrb[0].mxu0
  %v323 = vadd.f32 0.0, %v322
  %v324 = vpop.f32.mrb[0].mxu0
  %325 = vmatprep.mubr.f32.mxu0 0.0
  %326 = vmatmul.mubr.f32.gmra.mrb[0].mxu0 %v96
  %v327 = vpop.f32.mrb[0].mxu0
  %v328 = vadd.f32 0.0, %v327
  %v329 = vpop.f32.mrb[0].mxu0
  %330 = vmatprep.mubr.f32.mxu0 0.0
  %331 = vmatmul.mubr.f32.gmra.mrb[0].mxu0 %v99
  %v332 = vpop.f32.mrb[0].mxu0
  %v333 = vadd.f32 0.0, %v332
  %v334 = vpop.f32.mrb[0].mxu0
  %335 = vmatprep.mubr.f32.mxu0 0.0
  %336 = vmatmul.mubr.f32.gmra.mrb[0].mxu0 %v102
  %v337 = vpop.f32.mrb[0].mxu0
  %v338 = vadd.f32 0.0, %v337
  %v339 = vpop.f32.mrb[0].mxu0
  %340 = vmatprep.mubr.f32.mxu0 0.0
  %341 = vmatmul.mubr.f32.gmra.mrb[0].mxu0 %v105
  %v342 = vpop.f32.mrb[0].mxu0
  %v343 = vadd.f32 0.0, %v342
  %v344 = vpop.f32.mrb[0].mxu0
  %345 = vmatprep.mubr.f32.mxu0 0.0
  %346 = vmatmul.mubr.f32.gmra.mrb[0].mxu0 %v108
  %v347 = vpop.f32.mrb[0].mxu0
  %v348 = vadd.f32 0.0, %v347
  %v349 = vpop.f32.mrb[0].mxu0
  %350 = vmatprep.mubr.f32.mxu0 0.0
  %351 = vmatmul.mubr.f32.gmra.mrb[0].mxu0 %v111
  %v352 = vpop.f32.mrb[0].mxu0
  %v353 = vadd.f32 0.0, %v352
  %v354 = vpop.f32.mrb[0].mxu0
  %355 = vmatprep.mubr.f32.mxu0 0.0
  %356 = vmatmul.mubr.f32.gmra.mrb[0].mxu0 %v114
  %v357 = vpop.f32.mrb[0].mxu0
  %v358 = vadd.f32 0.0, %v357
  %v359 = vpop.f32.mrb[0].mxu0
  %360 = vmatprep.mubr.f32.mxu0 0.0
  %361 = vmatmul.mubr.f32.gmra.mrb[0].mxu0 %v117
  %v362 = vpop.f32.mrb[0].mxu0
  %v363 = vadd.f32 0.0, %v362
  %v364 = vpop.f32.mrb[0].mxu0
  %365 = vmatprep.mubr.f32.mxu0 0.0
  %366 = vmatmul.mubr.f32.gmra.mrb[0].mxu0 %v120
  %v367 = vpop.f32.mrb[0].mxu0
  %v368 = vadd.f32 0.0, %v367
  %v369 = vpop.f32.mrb[0].mxu0
  %370 = vmatprep.mubr.f32.mxu0 0.0
  %371 = vmatmul.mubr.f32.gmra.mrb[0].mxu0 %v123
  %v372 = vpop.f32.mrb[0].mxu0
  %v373 = vadd.f32 0.0, %v372
  %v374 = vpop.f32.mrb[0].mxu0
  %375 = vmatprep.mubr.f32.mxu0 0.0
  %376 = vmatmul.mubr.f32.gmra.mrb[0].mxu0 %v126
  %v377 = vpop.f32.mrb[0].mxu0
  %v378 = vadd.f32 0.0, %v377
  %v379 = vpop.f32.mrb[0].mxu0
  %380 = vmatprep.mubr.f32.mxu0 0.0
  %381 = vmatmul.mubr.f32.gmra.mrb[0].mxu0 %v129
  %v382 = vpop.f32.mrb[0].mxu0
  %v383 = vadd.f32 0.0, %v382
  %v384 = vpop.f32.mrb[0].mxu0
  %385 = vmatprep.mubr.f32.mxu0 0.0
  %386 = vmatmul.mubr.f32.gmra.mrb[0].mxu0 %v132
  %v387 = vpop.f32.mrb[0].mxu0
  %v388 = vadd.f32 0.0, %v387
  %v389 = vpop.f32.mrb[0].mxu0
  %390 = vmatprep.mubr.f32.mxu0 0.0
  %391 = vmatmul.mubr.f32.gmra.mrb[0].mxu0 %v135
  %v392 = vpop.f32.mrb[0].mxu0
  %v393 = vadd.f32 0.0, %v392
  %v394 = vpop.f32.mrb[0].mxu0
  %395 = vmatprep.mubr.f32.mxu0 0.0
  %396 = vmatmul.mubr.f32.gmra.mrb[0].mxu0 %v138
  %v397 = vpop.f32.mrb[0].mxu0
  %v398 = vadd.f32 0.0, %v397
  %v399 = vpop.f32.mrb[0].mxu0
  %400 = vmatprep.mubr.f32.mxu0 0.0
  %401 = vmatmul.mubr.f32.gmra.mrb[0].mxu0 %v141
  %v402 = vpop.f32.mrb[0].mxu0
  %v403 = vadd.f32 0.0, %v402
  %v404 = vpop.f32.mrb[0].mxu0
  %405 = vmatprep.mubr.f32.mxu0 0.0
  %406 = vmatmul.mubr.f32.gmra.mrb[0].mxu0 %v144
  %v407 = vpop.f32.mrb[0].mxu0
  %v408 = vadd.f32 0.0, %v407
  %v409 = vpop.f32.mrb[0].mxu0
  %410 = vmatprep.mubr.f32.mxu0 0.0
  %411 = vmatmul.mubr.f32.gmra.mrb[0].mxu0 %v147
  %v412 = vpop.f32.mrb[0].mxu0
  %v413 = vadd.f32 0.0, %v412
  %v414 = vpop.f32.mrb[0].mxu0
  %415 = vmatprep.mubr.f32.mxu0 0.0
  %416 = vmatmul.mubr.f32.gmra.mrb[0].mxu0 %v150
  %v417 = vpop.f32.mrb[0].mxu0
  %v418 = vadd.f32 0.0, %v417
  %v419 = vpop.f32.mrb[0].mxu0
  %420 = vmatprep.mubr.f32.mxu0 0.0
  %421 = vmatmul.mubr.f32.gmra.mrb[0].mxu0 %v153
  %v422 = vpop.f32.mrb[0].mxu0
  %v423 = vadd.f32 0.0, %v422
  %v424 = vpop.f32.mrb[0].mxu0
  %425 = vmatprep.mubr.f32.mxu0 0.0
  %426 = vmatmul.mubr.f32.gmra.mrb[0].mxu0 %v156
  %v427 = vpop.f32.mrb[0].mxu0
  %v428 = vadd.f32 0.0, %v427
  %v429 = vpop.f32.mrb[0].mxu0
  %430 = vmatprep.mubr.f32.mxu0 0.0
  %431 = vmatmul.mubr.f32.gmra.mrb[0].mxu0 %v159
  %v432 = vpop.f32.mrb[0].mxu0
  %v433 = vadd.f32 0.0, %v432
  %v434 = vpop.f32.mrb[0].mxu0
  %435 = vmatprep.mubr.f32.mxu0 0.0
  %436 = vmatmul.mubr.f32.gmra.mrb[0].mxu0 %v162
  %v437 = vpop.f32.mrb[0].mxu0
  %v438 = vadd.f32 0.0, %v437
  %v439 = vpop.f32.mrb[0].mxu0
  %440 = vmatprep.mubr.f32.mxu0 0.0
  %441 = vmatmul.mubr.f32.gmra.mrb[0].mxu0 %v165
  %v442 = vpop.f32.mrb[0].mxu0
  %v443 = vadd.f32 0.0, %v442
  %v444 = vpop.f32.mrb[0].mxu0
  %445 = vmatprep.mubr.f32.mxu0 0.0
  %446 = vmatmul.mubr.f32.gmra.mrb[0].mxu0 %v168
  %v447 = vpop.f32.mrb[0].mxu0
  %v448 = vadd.f32 0.0, %v447
  %v449 = vpop.f32.mrb[0].mxu0
  %450 = vmatprep.mubr.f32.mxu0 0.0
  %451 = vmatmul.mubr.f32.gmra.mrb[0].mxu0 %v171
  %v452 = vpop.f32.mrb[0].mxu0
  %v453 = vadd.f32 0.0, %v452
  %v454 = vpop.f32.mrb[0].mxu0
  %455 = vmatprep.mubr.f32.mxu0 0.0
  %456 = vmatmul.mubr.f32.gmra.mrb[0].mxu0 %v174
  %v457 = vpop.f32.mrb[0].mxu0
  %v458 = vadd.f32 0.0, %v457
  %v459 = vpop.f32.mrb[0].mxu0
  %460 = vmatprep.mubr.f32.mxu0 0.0
  %461 = vmatmul.mubr.f32.gmra.mrb[0].mxu0 %v177
  %v462 = vpop.f32.mrb[0].mxu0
  %v463 = vadd.f32 0.0, %v462
  %v464 = vpop.f32.mrb[0].mxu0
  %465 = vmatprep.mubr.f32.mxu0 0.0
  %466 = vmatmul.mubr.f32.gmra.mrb[0].mxu0 %v180
  %v467 = vpop.f32.mrb[0].mxu0
  %v468 = vadd.f32 0.0, %v467
  %v469 = vpop.f32.mrb[0].mxu0
  %470 = vmatprep.mubr.f32.mxu0 0.0
  %471 = vmatmul.mubr.f32.gmra.mrb[0].mxu0 %v183
  %v472 = vpop.f32.mrb[0].mxu0
  %v473 = vadd.f32 0.0, %v472
  %v474 = vpop.f32.mrb[0].mxu0
  %475 = vmatprep.mubr.f32.mxu0 0.0
  %476 = vmatmul.mubr.f32.gmra.mrb[0].mxu0 %v186
  %v477 = vpop.f32.mrb[0].mxu0
  %v478 = vadd.f32 0.0, %v477
  %v479 = vpop.f32.mrb[0].mxu0
  %480 = vmatprep.mubr.f32.mxu0 0.0
  %481 = vmatmul.mubr.f32.gmra.mrb[0].mxu0 %v189
  %v482 = vpop.f32.mrb[0].mxu0
  %v483 = vadd.f32 0.0, %v482
  %v484 = vpop.f32.mrb[0].mxu0
  %485 = vmatprep.mubr.f32.mxu0 0.0
  %486 = vmatmul.mubr.f32.gmra.mrb[0].mxu0 %v192
  %v487 = vpop.f32.mrb[0].mxu0
  %v488 = vadd.f32 0.0, %v487
  %v489 = vpop.f32.mrb[0].mxu0
  %490 = vmatprep.mubr.f32.mxu0 0.0
  %491 = vmatmul.mubr.f32.gmra.mrb[0].mxu0 %v195
  %v492 = vpop.f32.mrb[0].mxu0
  %v493 = vadd.f32 0.0, %v492
  %v494 = vpop.f32.mrb[0].mxu0
  %495 = vmatprep.mubr.f32.mxu0 0.0
  %496 = vmatmul.mubr.f32.gmra.mrb[0].mxu0 %v198
  %v497 = vpop.f32.mrb[0].mxu0
  %v498 = vadd.f32 0.0, %v497
  %v499 = vpop.f32.mrb[0].mxu0
  %500 = vmatprep.mubr.f32.mxu0 0.0
  %501 = vmatmul.mubr.f32.gmra.mrb[0].mxu0 %v201
  %v502 = vpop.f32.mrb[0].mxu0
  %v503 = vadd.f32 0.0, %v502
  %v504 = vpop.f32.mrb[0].mxu0
  %505 = vmatprep.mubr.f32.mxu0 0.0
  %506 = vmatmul.mubr.f32.gmra.mrb[0].mxu0 %v204
  %v507 = vpop.f32.mrb[0].mxu0
  %v508 = vadd.f32 0.0, %v507
  %v509 = vpop.f32.mrb[0].mxu0
  %510 = vdwg.mxu0
  %vm511 = vcmask 654336
  %512 = vst.msk [vmem:[%s2] sm:$0xff] %vm511, %v273
  %513 = vst.msk [vmem:[%s2 + $0x8] sm:$0xff] %vm511, %v278
  %514 = vst.msk [vmem:[%s2 + $0x10] sm:$0xff] %vm511, %v283
  %515 = vst.msk [vmem:[%s2 + $0x18] sm:$0xff] %vm511, %v288
  %516 = vst.msk [vmem:[%s2 + $0x20] sm:$0xff] %vm511, %v293
  %517 = vst.msk [vmem:[%s2 + $0x28] sm:$0xff] %vm511, %v298
  %518 = vst.msk [vmem:[%s2 + $0x30] sm:$0xff] %vm511, %v303
  %519 = vst.msk [vmem:[%s2 + $0x38] sm:$0xff] %vm511, %v308
  %520 = vst.msk [vmem:[%s2 + $0x40] sm:$0xff] %vm511, %v313
  %521 = vst.msk [vmem:[%s2 + $0x48] sm:$0xff] %vm511, %v318
  %522 = vst.msk [vmem:[%s2 + $0x50] sm:$0xff] %vm511, %v323
  %523 = vst.msk [vmem:[%s2 + $0x58] sm:$0xff] %vm511, %v328
  %524 = vst.msk [vmem:[%s2 + $0x60] sm:$0xff] %vm511, %v333
  %525 = vst.msk [vmem:[%s2 + $0x68] sm:$0xff] %vm511, %v338
  %526 = vst.msk [vmem:[%s2 + $0x70] sm:$0xff] %vm511, %v343
  %527 = vst.msk [vmem:[%s2 + $0x78] sm:$0xff] %vm511, %v348
  %528 = vst.msk [vmem:[%s2 + $0x80] sm:$0xff] %vm511, %v353
  %529 = vst.msk [vmem:[%s2 + $0x88] sm:$0xff] %vm511, %v358
  %530 = vst.msk [vmem:[%s2 + $0x90] sm:$0xff] %vm511, %v363
  %531 = vst.msk [vmem:[%s2 + $0x98] sm:$0xff] %vm511, %v368
  %532 = vst.msk [vmem:[%s2 + $0xa0] sm:$0xff] %vm511, %v373
  %533 = vst.msk [vmem:[%s2 + $0xa8] sm:$0xff] %vm511, %v378
  %534 = vst.msk [vmem:[%s2 + $0xb0] sm:$0xff] %vm511, %v383
  %535 = vst.msk [vmem:[%s2 + $0xb8] sm:$0xff] %vm511, %v388
  %536 = vst.msk [vmem:[%s2 + $0xc0] sm:$0xff] %vm511, %v393
  %537 = vst.msk [vmem:[%s2 + $0xc8] sm:$0xff] %vm511, %v398
  %538 = vst.msk [vmem:[%s2 + $0xd0] sm:$0xff] %vm511, %v403
  %539 = vst.msk [vmem:[%s2 + $0xd8] sm:$0xff] %vm511, %v408
  %540 = vst.msk [vmem:[%s2 + $0xe0] sm:$0xff] %vm511, %v413
  %541 = vst.msk [vmem:[%s2 + $0xe8] sm:$0xff] %vm511, %v418
  %542 = vst.msk [vmem:[%s2 + $0xf0] sm:$0xff] %vm511, %v423
  %543 = vst.msk [vmem:[%s2 + $0xf8] sm:$0xff] %vm511, %v428
  %544 = vst.msk [vmem:[%s2 + $0x100] sm:$0xff] %vm511, %v433
  %545 = vst.msk [vmem:[%s2 + $0x108] sm:$0xff] %vm511, %v438
  %546 = vst.msk [vmem:[%s2 + $0x110] sm:$0xff] %vm511, %v443
  %547 = vst.msk [vmem:[%s2 + $0x118] sm:$0xff] %vm511, %v448
  %548 = vst.msk [vmem:[%s2 + $0x120] sm:$0xff] %vm511, %v453
  %549 = vst.msk [vmem:[%s2 + $0x128] sm:$0xff] %vm511, %v458
  %550 = vst.msk [vmem:[%s2 + $0x130] sm:$0xff] %vm511, %v463
  %551 = vst.msk [vmem:[%s2 + $0x138] sm:$0xff] %vm511, %v468
  %552 = vst.msk [vmem:[%s2 + $0x140] sm:$0xff] %vm511, %v473
  %553 = vst.msk [vmem:[%s2 + $0x148] sm:$0xff] %vm511, %v478
  %554 = vst.msk [vmem:[%s2 + $0x150] sm:$0xff] %vm511, %v483
  %555 = vst.msk [vmem:[%s2 + $0x158] sm:$0xff] %vm511, %v488
  %556 = vst.msk [vmem:[%s2 + $0x160] sm:$0xff] %vm511, %v493
  %557 = vst.msk [vmem:[%s2 + $0x168] sm:$0xff] %vm511, %v498
  %558 = vst.msk [vmem:[%s2 + $0x170] sm:$0xff] %vm511, %v503
  %559 = vst.msk [vmem:[%s2 + $0x178] sm:$0xff] %vm511, %v508
  // Predicated region
  $region10: #{tpu_custom_call.1} parent=0 // pred_check
    _
  $region11: #{tpu_custom_call.1} parent=0 // pred_check_branch
    %561 = sbr.rel (0) target = $region13
  $region12: #{tpu_custom_call.1} parent=0 // pred_region
    _
  $region13: #{tpu_custom_call.1} parent=0 // pred_fallthru
    _
  // Predicated region
  $region14: #{tpu_custom_call.1} parent=0 // pred_check
    _
  $region15: #{tpu_custom_call.1} parent=0 // pred_check_branch
    %563 = sbr.rel (0) target = $region17
  $region16: #{tpu_custom_call.1} parent=0 // pred_region
    _
  $region17: #{tpu_custom_call.1} parent=0 // pred_fallthru
    _

</llo_original>
